<compile_context>
chip_gen: v6e
topology: v6e:2x2x1
jax: 0.10.0
libtpu: 0.0.40
codegen_flags: <defaults>
</compile_context>

<pallas_src>
import jax
import jax.numpy as jnp
from jax import lax
from jax.experimental import pallas as pl
from jax.experimental.pallas import tpu as pltpu

F_SIZE = 34
H1 = 300
H2 = 75
NUM_CLASSES = 1
BN_EPS = 1e-5


def _round_up(n, m):
    return ((n + m - 1) // m) * m


def _mlp_kernel(x_ref, w1_ref, b1_ref, w2_ref, b2_ref, w3_ref, b3_ref, o_ref):
    # x_ref is the raw [tb, F] batch-major tile (HBM dtype); cast in VMEM only.
    x_blk = x_ref[...].astype(w1_ref.dtype)                          # (tb, F)

    # fc1 (+ folded bn1): contract the feature dim of W (H1, F) with the
    # feature dim of x (tb, F) -> (H1, tb).  Feature-major result keeps the
    # batch on the lane axis; no materialized transpose of x.
    h1 = lax.dot_general(w1_ref[...], x_blk, (((1,), (1,)), ((), ())),
                         preferred_element_type=jnp.float32)         # (H1, tb) f32 acc
    h1 = jnp.maximum(h1.astype(b1_ref.dtype) + b1_ref[...], 0)       # bias+relu in compute dtype

    # dropout(p=0.4) is identity at inference time.
    # TODO(synk): training-mode dropout (random mask + 1/(1-p) scale) not implemented.

    # fc2 (+ folded bn2) + relu
    h2 = jnp.dot(w2_ref[...], h1, preferred_element_type=jnp.float32)  # (H2, tb)
    h2 = jnp.maximum(h2.astype(b2_ref.dtype) + b2_ref[...], 0)

    # fc3 — (1, tb) lane-dense output store.
    out = jnp.dot(w3_ref[...], h2, preferred_element_type=jnp.float32)
    o_ref[...] = (out + b3_ref[...]).astype(o_ref.dtype)


def fold_params(params, *, compute_dtype=jnp.float32):
    """Fold eval-mode BatchNorm scale/shift and the Linear bias into the weights.

    Call ONCE at model-load time (hoisted out of the per-forward path).
    Use compute_dtype=jnp.bfloat16 on v6e/v7x, jnp.float32 on v5e.
    """
    s1 = params["bn1_g"] / jnp.sqrt(params["bn1_var"] + BN_EPS)
    t1 = params["bn1_b"] - params["bn1_mean"] * s1
    s2 = params["bn2_g"] / jnp.sqrt(params["bn2_var"] + BN_EPS)
    t2 = params["bn2_b"] - params["bn2_mean"] * s2
    return {
        # PyTorch Linear W is [out, in]; the feature-major kernel wants exactly that.
        "w1": (params["fc1_w"] * s1[:, None]).astype(compute_dtype),          # (H1, F)
        "b1": (params["fc1_b"] * s1 + t1).astype(compute_dtype).reshape(H1, 1),
        "w2": (params["fc2_w"] * s2[:, None]).astype(compute_dtype),          # (H2, H1)
        "b2": (params["fc2_b"] * s2 + t2).astype(compute_dtype).reshape(H2, 1),
        "w3": params["fc3_w"].astype(compute_dtype),                          # (NC, H2)
        "b3": params["fc3_b"].astype(jnp.float32).reshape(NUM_CLASSES, 1),
    }


def relation_aware_net_forward(x, folded, *, tb=2048):
    """x: [B, F_SIZE] float32, folded: output of fold_params.
    Returns logits [B, NUM_CLASSES] float32."""
    B = x.shape[0]

    # Batch tile: multiple of 128 (lane-dense output stores).  When B fits in
    # <= 2 tiles, shrink the tile so the grid has >= 2 steps and the
    # ("parallel",) axis can shard across both v7x TensorCores.
    tb = max(128, (int(tb) // 128) * 128)
    tb_eff = min(tb, max(128, _round_up(pl.cdiv(B, 2), 128)))
    num_blocks = pl.cdiv(B, tb_eff)
    Bp = num_blocks * tb_eff          # grid extent; NO input pad copy is made.

    w_bytes = jnp.dtype(folded["w1"].dtype).itemsize
    x_bytes = jnp.dtype(x.dtype).itemsize
    cost = pl.CostEstimate(
        flops=2 * B * (F_SIZE * H1 + H1 * H2 + H2 * NUM_CLASSES),
        transcendentals=0,
        bytes_accessed=(B * F_SIZE * x_bytes
                        + (H1 * F_SIZE + H2 * H1 + NUM_CLASSES * H2) * w_bytes
                        + B * NUM_CLASSES * 4),
    )

    full = lambda shape: pl.BlockSpec(shape, lambda i: (0, 0))   # grid-invariant operands

    grid_spec = pltpu.PrefetchScalarGridSpec(
        num_scalar_prefetch=0,
        grid=(num_blocks,),
        in_specs=[
            # Raw batch-major x tile; last (partial) block is masked by Pallas.
            pl.BlockSpec((tb_eff, F_SIZE), lambda i: (i, 0)),
            full((H1, F_SIZE)), full((H1, 1)),
            full((H2, H1)), full((H2, 1)),
            full((NUM_CLASSES, H2)), full((NUM_CLASSES, 1)),
        ],
        out_specs=pl.BlockSpec((NUM_CLASSES, tb_eff), lambda i: (0, i)),
    )

    fn = pl.pallas_call(
        _mlp_kernel,
        out_shape=jax.ShapeDtypeStruct((NUM_CLASSES, Bp), jnp.float32),
        grid_spec=grid_spec,
        compiler_params=pltpu.CompilerParams(
            dimension_semantics=("parallel",),      # megacore-shard batch on v7x
            vmem_limit_bytes=32 * 1024 * 1024),     # sized against v7x's 64 MiB VMEM
        cost_estimate=cost,
    )
    out_t = fn(x, folded["w1"], folded["b1"], folded["w2"], folded["b2"],
               folded["w3"], folded["b3"])          # (NC, Bp)
    return jnp.transpose(out_t[:, :B])              # (B, NC); tail garbage sliced away


def init_params(key):
    ks = jax.random.split(key, 10)
    n = lambda k, shape, scale: (scale * jax.random.normal(k, shape)).astype(jnp.float32)
    return {
        "fc1_w": n(ks[0], (H1, F_SIZE), 0.1),
        "fc1_b": n(ks[1], (H1,), 0.1),
        "bn1_g": 1.0 + n(ks[2], (H1,), 0.05),
        "bn1_b": n(ks[3], (H1,), 0.05),
        "bn1_mean": n(ks[4], (H1,), 0.05),
        "bn1_var": jnp.abs(1.0 + n(ks[5], (H1,), 0.05)),
        "fc2_w": n(ks[6], (H2, H1), 0.1),
        "fc2_b": n(ks[7], (H2,), 0.1),
        "bn2_g": jnp.ones((H2,), jnp.float32),
        "bn2_b": jnp.zeros((H2,), jnp.float32),
        "bn2_mean": jnp.zeros((H2,), jnp.float32),
        "bn2_var": jnp.ones((H2,), jnp.float32),
        "fc3_w": n(ks[8], (NUM_CLASSES, H2), 0.1),
        "fc3_b": n(ks[9], (NUM_CLASSES,), 0.1),
        # logit_scale exists in the module but is unused in forward().
        "logit_scale": jnp.ones((NUM_CLASSES,), jnp.float32),
    }


def _reference(x, p):
    s1 = p["bn1_g"] / jnp.sqrt(p["bn1_var"] + BN_EPS)
    t1 = p["bn1_b"] - p["bn1_mean"] * s1
    s2 = p["bn2_g"] / jnp.sqrt(p["bn2_var"] + BN_EPS)
    t2 = p["bn2_b"] - p["bn2_mean"] * s2
    h1 = jnp.maximum((x @ p["fc1_w"].T + p["fc1_b"]) * s1 + t1, 0.0)
    h2 = jnp.maximum((h1 @ p["fc2_w"].T + p["fc2_b"]) * s2 + t2, 0.0)
    return h2 @ p["fc3_w"].T + p["fc3_b"]


if __name__ == "__main__":
    key = jax.random.PRNGKey(0)
    kx, kp = jax.random.split(key)
    params = init_params(kp)

    # Fold BN/bias into the weights ONCE (model-load time), per dtype path.
    folded_f32 = fold_params(params, compute_dtype=jnp.float32)
    folded_bf16 = fold_params(params, compute_dtype=jnp.bfloat16)

    # --- small batch (single grid step, partial input block) ---
    B = 8
    x = jax.random.normal(kx, (B, F_SIZE), dtype=jnp.float32)
    ref = _reference(x, params)

    out = jax.block_until_ready(relation_aware_net_forward(x, folded_f32, tb=2048))
    assert out.shape == (B, NUM_CLASSES)
    assert jnp.allclose(out, ref, atol=1e-4, rtol=1e-4), "f32 kernel mismatch vs reference"

    # bf16 weights / intermediates with f32 MXU accumulation (fast path on v6e/v7x).
    out_bf16 = jax.block_until_ready(relation_aware_net_forward(x, folded_bf16, tb=2048))
    assert out_bf16.shape == (B, NUM_CLASSES)
    assert jnp.allclose(out_bf16, ref, atol=1e-1, rtol=1e-1), "bf16 kernel mismatch vs reference"

    # --- non-tile-aligned batch: exercises multi-step grid + masked tail block ---
    B2 = 300
    x2 = jax.random.normal(kx, (B2, F_SIZE), dtype=jnp.float32)
    out2 = jax.block_until_ready(relation_aware_net_forward(x2, folded_f32, tb=2048))
    assert out2.shape == (B2, NUM_CLASSES)
    assert jnp.allclose(out2, _reference(x2, params), atol=1e-4, rtol=1e-4), \
        "f32 kernel mismatch vs reference (unaligned batch)"

    print("KERNEL_OK")
</pallas_src>

<mosaic_0001>
module attributes {stable_mosaic.version = 11 : i64} {
  func.func @_mlp_kernel(%arg0: i32, %arg1: memref<128x34xf32, #tpu.memory_space<vmem>>, %arg2: memref<300x34xf32, #tpu.memory_space<vmem>>, %arg3: memref<300x1xf32, #tpu.memory_space<vmem>>, %arg4: memref<75x300xf32, #tpu.memory_space<vmem>>, %arg5: memref<75x1xf32, #tpu.memory_space<vmem>>, %arg6: memref<1x75xf32, #tpu.memory_space<vmem>>, %arg7: memref<1x1xf32, #tpu.memory_space<vmem>>, %arg8: memref<1x128xf32, #tpu.memory_space<vmem>>) attributes {dimension_semantics = [#tpu.dimension_semantics<parallel>], iteration_bounds = array<i64: 1>, scalar_prefetch = 0 : i64, scratch_operands = 0 : i64, tpu.core_type = #tpu.core_type<tc>, window_params = [{transform_indices = @transform_0, window_bounds = array<i64: 128, 34>}, {pipeline_mode = #tpu.pipeline_mode<synchronous>, transform_indices = @transform_1, window_bounds = array<i64: 300, 34>}, {pipeline_mode = #tpu.pipeline_mode<synchronous>, transform_indices = @transform_2, window_bounds = array<i64: 300, 1>}, {pipeline_mode = #tpu.pipeline_mode<synchronous>, transform_indices = @transform_3, window_bounds = array<i64: 75, 300>}, {pipeline_mode = #tpu.pipeline_mode<synchronous>, transform_indices = @transform_4, window_bounds = array<i64: 75, 1>}, {pipeline_mode = #tpu.pipeline_mode<synchronous>, transform_indices = @transform_5, window_bounds = array<i64: 1, 75>}, {pipeline_mode = #tpu.pipeline_mode<synchronous>, transform_indices = @transform_6, window_bounds = array<i64: 1, 1>}, {transform_indices = @transform_7, window_bounds = array<i64: 1, 128>}]} {
    %c0 = arith.constant 0 : index
    %c0_0 = arith.constant 0 : index
    %0 = vector.load %arg1[%c0, %c0_0] : memref<128x34xf32, #tpu.memory_space<vmem>>, vector<128x34xf32>
    %c0_1 = arith.constant 0 : index
    %c0_2 = arith.constant 0 : index
    %1 = vector.load %arg2[%c0_1, %c0_2] : memref<300x34xf32, #tpu.memory_space<vmem>>, vector<300x34xf32>
    %cst = arith.constant dense<0.000000e+00> : vector<300x128xf32>
    %2 = tpu.matmul %1, %0, %cst {dimension_numbers = #tpu.dot_dimension_numbers<[1], [1], [0], [0], [0, 0, 1, 0], [], []>} : vector<300x34xf32>, vector<128x34xf32>, vector<300x128xf32> -> vector<300x128xf32>
    %c0_3 = arith.constant 0 : index
    %c0_4 = arith.constant 0 : index
    %3 = vector.load %arg3[%c0_3, %c0_4] : memref<300x1xf32, #tpu.memory_space<vmem>>, vector<300x1xf32>
    %4 = vector.broadcast %3 : vector<300x1xf32> to vector<300x128xf32>
    %5 = arith.addf %2, %4 : vector<300x128xf32>
    %cst_5 = arith.constant 0.000000e+00 : f32
    %6 = vector.broadcast %cst_5 : f32 to vector<300x128xf32>
    %7 = arith.maximumf %5, %6 : vector<300x128xf32>
    %c0_6 = arith.constant 0 : index
    %c0_7 = arith.constant 0 : index
    %8 = vector.load %arg4[%c0_6, %c0_7] : memref<75x300xf32, #tpu.memory_space<vmem>>, vector<75x300xf32>
    %cst_8 = arith.constant dense<0.000000e+00> : vector<75x128xf32>
    %9 = tpu.matmul %8, %7, %cst_8 {dimension_numbers = #tpu.dot_dimension_numbers<[1], [0], [0], [1], [0, 0, 1, 1], [], []>} : vector<75x300xf32>, vector<300x128xf32>, vector<75x128xf32> -> vector<75x128xf32>
    %c0_9 = arith.constant 0 : index
    %c0_10 = arith.constant 0 : index
    %10 = vector.load %arg5[%c0_9, %c0_10] : memref<75x1xf32, #tpu.memory_space<vmem>>, vector<75x1xf32>
    %11 = vector.broadcast %10 : vector<75x1xf32> to vector<75x128xf32>
    %12 = arith.addf %9, %11 : vector<75x128xf32>
    %cst_11 = arith.constant 0.000000e+00 : f32
    %13 = vector.broadcast %cst_11 : f32 to vector<75x128xf32>
    %14 = arith.maximumf %12, %13 : vector<75x128xf32>
    %c0_12 = arith.constant 0 : index
    %c0_13 = arith.constant 0 : index
    %15 = vector.load %arg6[%c0_12, %c0_13] : memref<1x75xf32, #tpu.memory_space<vmem>>, vector<1x75xf32>
    %cst_14 = arith.constant dense<0.000000e+00> : vector<1x128xf32>
    %16 = tpu.matmul %15, %14, %cst_14 {dimension_numbers = #tpu.dot_dimension_numbers<[1], [0], [0], [1], [0, 0, 1, 1], [], []>} : vector<1x75xf32>, vector<75x128xf32>, vector<1x128xf32> -> vector<1x128xf32>
    %c0_15 = arith.constant 0 : index
    %c0_16 = arith.constant 0 : index
    %17 = vector.load %arg7[%c0_15, %c0_16] : memref<1x1xf32, #tpu.memory_space<vmem>>, vector<1x1xf32>
    %18 = vector.broadcast %17 : vector<1x1xf32> to vector<1x128xf32>
    %19 = arith.addf %16, %18 : vector<1x128xf32>
    %c0_17 = arith.constant 0 : index
    %c0_18 = arith.constant 0 : index
    %20 = vector.load %arg8[%c0_17, %c0_18] : memref<1x128xf32, #tpu.memory_space<vmem>>, vector<1x128xf32>
    tpu.vector_store %arg8[%c0_17, %c0_18], %19 {strides = array<i32>} : memref<1x128xf32, #tpu.memory_space<vmem>>, vector<1x128xf32>,
    return
  }
  func.func @transform_0(%arg0: i32) -> (i32, i32) {
    %c0_i32 = arith.constant 0 : i32
    %c0_i32_0 = arith.constant 0 : i32
    return %arg0, %c0_i32 : i32, i32
  }
  func.func @transform_1(%arg0: i32) -> (i32, i32) {
    %c0_i32 = arith.constant 0 : i32
    %c0_i32_0 = arith.constant 0 : i32
    %c0_i32_1 = arith.constant 0 : i32
    return %c0_i32, %c0_i32_0 : i32, i32
  }
  func.func @transform_2(%arg0: i32) -> (i32, i32) {
    %c0_i32 = arith.constant 0 : i32
    %c0_i32_0 = arith.constant 0 : i32
    %c0_i32_1 = arith.constant 0 : i32
    return %c0_i32, %c0_i32_0 : i32, i32
  }
  func.func @transform_3(%arg0: i32) -> (i32, i32) {
    %c0_i32 = arith.constant 0 : i32
    %c0_i32_0 = arith.constant 0 : i32
    %c0_i32_1 = arith.constant 0 : i32
    return %c0_i32, %c0_i32_0 : i32, i32
  }
  func.func @transform_4(%arg0: i32) -> (i32, i32) {
    %c0_i32 = arith.constant 0 : i32
    %c0_i32_0 = arith.constant 0 : i32
    %c0_i32_1 = arith.constant 0 : i32
    return %c0_i32, %c0_i32_0 : i32, i32
  }
  func.func @transform_5(%arg0: i32) -> (i32, i32) {
    %c0_i32 = arith.constant 0 : i32
    %c0_i32_0 = arith.constant 0 : i32
    %c0_i32_1 = arith.constant 0 : i32
    return %c0_i32, %c0_i32_0 : i32, i32
  }
  func.func @transform_6(%arg0: i32) -> (i32, i32) {
    %c0_i32 = arith.constant 0 : i32
    %c0_i32_0 = arith.constant 0 : i32
    %c0_i32_1 = arith.constant 0 : i32
    return %c0_i32, %c0_i32_0 : i32, i32
  }
  func.func @transform_7(%arg0: i32) -> (i32, i32) {
    %c0_i32 = arith.constant 0 : i32
    %c0_i32_0 = arith.constant 0 : i32
    return %c0_i32, %arg0 : i32, i32
  }
}

</mosaic_0001>

<llo_original>
// kernel: tpu_custom_call.1
$region0: #{tpu_custom_call.1}
  #allocation0 [shape = 'u32[]', space=smem, size = 0x4, offset = 0x4, fixed_abs, tag = 'smem constant byte address 0x4 - core index']
  #allocation1 [shape = 'u32[144,128]{1,0:T(1,128)}', space=vmem, size = 0x12000, scoped, tag = 'internal scratch']
  #allocation2 [shape = 'f32[1,1]{1,0:T(1,128)S(1)}', space=vmem, size = 0x200, scoped, tag = 'scoped memory for tpu_custom_call.1']
  %s0 = inlined_call_operand.vmem [shape: f32[8,34], index: 0, kind: input, shape index: {}]
  %s1 = inlined_call_operand.vmem [shape: f32[300,34], index: 1, kind: input, shape index: {}]
  %s2 = inlined_call_operand.vmem [shape: f32[300,1], index: 2, kind: input, shape index: {}]
  %s3 = inlined_call_operand.vmem [shape: f32[75,300], index: 3, kind: input, shape index: {}]
  %s4 = inlined_call_operand.vmem [shape: f32[75,1], index: 4, kind: input, shape index: {}]
  %s5 = inlined_call_operand.vmem [shape: f32[1,75], index: 5, kind: input, shape index: {}]
  %s6 = inlined_call_operand.<no memory space> [shape: f32[1,1], index: 6, kind: input, shape index: {}]
  %s7 = inlined_call_operand.hbm [shape: f32[1,128], index: 7, kind: output, shape index: {}]
  %s8 = sld [smem:[#allocation0]]
  $region38: #{tpu_custom_call.1} parent=0
    _
  %s10 = ssub.s32 1, %s8
  %s11 = scalar_select 0, %s10, %s8
  %v12 = vstv %s6
  %13 = vst [vmem:[#allocation2] sm:$0x1] %v12
  $region1: #{tpu_custom_call.1} parent=0
    #allocation3 [shape = 'u8[512]{0}', space=vmem, size = 0x400, scoped, tag = 'output window, operand 0, single buffered']
    #allocation4 [shape = 's32[1]{0}', space=sflag, size = 0x4, scoped, tag = 'scoped memory for tpu_custom_call.1']
    %14 = vsyncpa [#allocation4], 0
    // Predicated region
    $region2: #{tpu_custom_call.1} parent=1 // pred_check
      _
    $region3: #{tpu_custom_call.1} parent=1 // pred_check_branch
      %16 = sbr.rel (0) target = $region5
    $region4: #{tpu_custom_call.1} parent=1 // pred_region
      _
    $region5: #{tpu_custom_call.1} parent=1 // pred_fallthru
      _
    // Predicated region
    $region6: #{tpu_custom_call.1} parent=1 // pred_check
      _
    $region7: #{tpu_custom_call.1} parent=1 // pred_check_branch
      %18 = sbr.rel (0) target = $region9
    $region8: #{tpu_custom_call.1} parent=1 // pred_region
      _
    $region9: #{tpu_custom_call.1} parent=1 // pred_fallthru
      _
    // Predicated region
    $region10: #{tpu_custom_call.1} parent=1 // pred_check
      _
    $region11: #{tpu_custom_call.1} parent=1 // pred_check_branch
      %20 = sbr.rel (0) target = $region13
    $region12: #{tpu_custom_call.1} parent=1 // pred_region
      _
    $region13: #{tpu_custom_call.1} parent=1 // pred_fallthru
      _
    // Predicated region
    $region14: #{tpu_custom_call.1} parent=1 // pred_check
      _
    $region15: #{tpu_custom_call.1} parent=1 // pred_check_branch
      %22 = sbr.rel (0) target = $region17
    $region16: #{tpu_custom_call.1} parent=1 // pred_region
      _
    $region17: #{tpu_custom_call.1} parent=1 // pred_fallthru
      _
    // Predicated region
    $region18: #{tpu_custom_call.1} parent=1 // pred_check
      _
    $region19: #{tpu_custom_call.1} parent=1 // pred_check_branch
      %24 = sbr.rel (0) target = $region21
    $region20: #{tpu_custom_call.1} parent=1 // pred_region
      _
    $region21: #{tpu_custom_call.1} parent=1 // pred_fallthru
      _
    // Predicated region
    $region22: #{tpu_custom_call.1} parent=1 // pred_check
      _
    $region23: #{tpu_custom_call.1} parent=1 // pred_check_branch
      %26 = sbr.rel (0) target = $region25
    $region24: #{tpu_custom_call.1} parent=1 // pred_region
      _
    $region25: #{tpu_custom_call.1} parent=1 // pred_fallthru
      _
    // Predicated region
    $region26: #{tpu_custom_call.1} parent=1 // pred_check
      _
    $region27: #{tpu_custom_call.1} parent=1 // pred_check_branch
      %28 = sbr.rel (0) target = $region29
    $region28: #{tpu_custom_call.1} parent=1 // pred_region
      _
    $region29: #{tpu_custom_call.1} parent=1 // pred_fallthru
      _
    %v29 = vld [vmem:[%s0] sm:$0xff]
    %v30 = vld [vmem:[%s0 + $0x8] sm:$0xff]
    %v31 = vld [vmem:[%s0 + $0x10] sm:$0xff]
    %v32 = vld [vmem:[%s0 + $0x18] sm:$0xff]
    %v33 = vld [vmem:[%s0 + $0x20] sm:$0xff]
    %v34 = vld [vmem:[%s0 + $0x28] sm:$0xff]
    %v35 = vld [vmem:[%s0 + $0x30] sm:$0xff]
    %v36 = vld [vmem:[%s0 + $0x38] sm:$0xff]
    %v37 = vld [vmem:[%s0 + $0x40] sm:$0xff]
    %v38 = vld [vmem:[%s0 + $0x48] sm:$0xff]
    %v39 = vld [vmem:[%s0 + $0x50] sm:$0xff]
    %v40 = vld [vmem:[%s0 + $0x58] sm:$0xff]
    %v41 = vld [vmem:[%s0 + $0x60] sm:$0xff]
    %v42 = vld [vmem:[%s0 + $0x68] sm:$0xff]
    %v43 = vld [vmem:[%s0 + $0x70] sm:$0xff]
    %v44 = vld [vmem:[%s0 + $0x78] sm:$0xff]
    %v45 = vld [vmem:[%s1] sm:$0xff]
    %v46 = vld [vmem:[%s1 + $0x8] sm:$0xff]
    %v47 = vld [vmem:[%s1 + $0x10] sm:$0xff]
    %v48 = vld [vmem:[%s1 + $0x18] sm:$0xff]
    %v49 = vld [vmem:[%s1 + $0x20] sm:$0xff]
    %v50 = vld [vmem:[%s1 + $0x28] sm:$0xff]
    %v51 = vld [vmem:[%s1 + $0x30] sm:$0xff]
    %v52 = vld [vmem:[%s1 + $0x38] sm:$0xff]
    %v53 = vld [vmem:[%s1 + $0x40] sm:$0xff]
    %v54 = vld [vmem:[%s1 + $0x48] sm:$0xff]
    %v55 = vld [vmem:[%s1 + $0x50] sm:$0xff]
    %v56 = vld [vmem:[%s1 + $0x58] sm:$0xff]
    %v57 = vld [vmem:[%s1 + $0x60] sm:$0xff]
    %v58 = vld [vmem:[%s1 + $0x68] sm:$0xff]
    %v59 = vld [vmem:[%s1 + $0x70] sm:$0xff]
    %v60 = vld [vmem:[%s1 + $0x78] sm:$0xff]
    %v61 = vld [vmem:[%s1 + $0x80] sm:$0xff]
    %v62 = vld [vmem:[%s1 + $0x88] sm:$0xff]
    %v63 = vld [vmem:[%s1 + $0x90] sm:$0xff]
    %v64 = vld [vmem:[%s1 + $0x98] sm:$0xff]
    %v65 = vld [vmem:[%s1 + $0xa0] sm:$0xff]
    %v66 = vld [vmem:[%s1 + $0xa8] sm:$0xff]
    %v67 = vld [vmem:[%s1 + $0xb0] sm:$0xff]
    %v68 = vld [vmem:[%s1 + $0xb8] sm:$0xff]
    %v69 = vld [vmem:[%s1 + $0xc0] sm:$0xff]
    %v70 = vld [vmem:[%s1 + $0xc8] sm:$0xff]
    %v71 = vld [vmem:[%s1 + $0xd0] sm:$0xff]
    %v72 = vld [vmem:[%s1 + $0xd8] sm:$0xff]
    %v73 = vld [vmem:[%s1 + $0xe0] sm:$0xff]
    %v74 = vld [vmem:[%s1 + $0xe8] sm:$0xff]
    %v75 = vld [vmem:[%s1 + $0xf0] sm:$0xff]
    %v76 = vld [vmem:[%s1 + $0xf8] sm:$0xff]
    %v77 = vld [vmem:[%s1 + $0x100] sm:$0xff]
    %v78 = vld [vmem:[%s1 + $0x108] sm:$0xff]
    %v79 = vld [vmem:[%s1 + $0x110] sm:$0xff]
    %v80 = vld [vmem:[%s1 + $0x118] sm:$0xff]
    %v81 = vld [vmem:[%s1 + $0x120] sm:$0xff]
    %v82 = vld [vmem:[%s1 + $0x128] sm:$0xf]
    %v83 = vld [vmem:[%s2] sm:$0xff]
    %v84 = vld [vmem:[%s2 + $0x8] sm:$0xff]
    %v85 = vld [vmem:[%s2 + $0x10] sm:$0xff]
    %v86 = vld [vmem:[%s2 + $0x18] sm:$0xff]
    %v87 = vld [vmem:[%s2 + $0x20] sm:$0xff]
    %v88 = vld [vmem:[%s2 + $0x28] sm:$0xff]
    %v89 = vld [vmem:[%s2 + $0x30] sm:$0xff]
    %v90 = vld [vmem:[%s2 + $0x38] sm:$0xff]
    %v91 = vld [vmem:[%s2 + $0x40] sm:$0xff]
    %v92 = vld [vmem:[%s2 + $0x48] sm:$0xff]
    %v93 = vld [vmem:[%s2 + $0x50] sm:$0xff]
    %v94 = vld [vmem:[%s2 + $0x58] sm:$0xff]
    %v95 = vld [vmem:[%s2 + $0x60] sm:$0xff]
    %v96 = vld [vmem:[%s2 + $0x68] sm:$0xff]
    %v97 = vld [vmem:[%s2 + $0x70] sm:$0xff]
    %v98 = vld [vmem:[%s2 + $0x78] sm:$0xff]
    %v99 = vld [vmem:[%s2 + $0x80] sm:$0xff]
    %v100 = vld [vmem:[%s2 + $0x88] sm:$0xff]
    %v101 = vld [vmem:[%s2 + $0x90] sm:$0xff]
    %v102 = vld [vmem:[%s2 + $0x98] sm:$0xff]
    %v103 = vld [vmem:[%s2 + $0xa0] sm:$0xff]
    %v104 = vld [vmem:[%s2 + $0xa8] sm:$0xff]
    %v105 = vld [vmem:[%s2 + $0xb0] sm:$0xff]
    %v106 = vld [vmem:[%s2 + $0xb8] sm:$0xff]
    %v107 = vld [vmem:[%s2 + $0xc0] sm:$0xff]
    %v108 = vld [vmem:[%s2 + $0xc8] sm:$0xff]
    %v109 = vld [vmem:[%s2 + $0xd0] sm:$0xff]
    %v110 = vld [vmem:[%s2 + $0xd8] sm:$0xff]
    %v111 = vld [vmem:[%s2 + $0xe0] sm:$0xff]
    %v112 = vld [vmem:[%s2 + $0xe8] sm:$0xff]
    %v113 = vld [vmem:[%s2 + $0xf0] sm:$0xff]
    %v114 = vld [vmem:[%s2 + $0xf8] sm:$0xff]
    %v115 = vld [vmem:[%s2 + $0x100] sm:$0xff]
    %v116 = vld [vmem:[%s2 + $0x108] sm:$0xff]
    %v117 = vld [vmem:[%s2 + $0x110] sm:$0xff]
    %v118 = vld [vmem:[%s2 + $0x118] sm:$0xff]
    %v119 = vld [vmem:[%s2 + $0x120] sm:$0xff]
    %v120 = vld [vmem:[%s2 + $0x128] sm:$0xf]
    %122 = vset.pattern.permute.xlu0 0
    %123 = vperm.xlu0 %122, %v83
    %v124 = vpop.permute.xlu0 %123
    %127 = vset.pattern.permute.xlu0 0
    %128 = vperm.xlu0 %127, %v84
    %v129 = vpop.permute.xlu0 %128
    %132 = vset.pattern.permute.xlu0 0
    %133 = vperm.xlu0 %132, %v85
    %v134 = vpop.permute.xlu0 %133
    %137 = vset.pattern.permute.xlu0 0
    %138 = vperm.xlu0 %137, %v86
    %v139 = vpop.permute.xlu0 %138
    %142 = vset.pattern.permute.xlu0 0
    %143 = vperm.xlu0 %142, %v87
    %v144 = vpop.permute.xlu0 %143
    %147 = vset.pattern.permute.xlu0 0
    %148 = vperm.xlu0 %147, %v88
    %v149 = vpop.permute.xlu0 %148
    %152 = vset.pattern.permute.xlu0 0
    %153 = vperm.xlu0 %152, %v89
    %v154 = vpop.permute.xlu0 %153
    %157 = vset.pattern.permute.xlu0 0
    %158 = vperm.xlu0 %157, %v90
    %v159 = vpop.permute.xlu0 %158
    %162 = vset.pattern.permute.xlu0 0
    %163 = vperm.xlu0 %162, %v91
    %v164 = vpop.permute.xlu0 %163
    %167 = vset.pattern.permute.xlu0 0
    %168 = vperm.xlu0 %167, %v92
    %v169 = vpop.permute.xlu0 %168
    %172 = vset.pattern.permute.xlu0 0
    %173 = vperm.xlu0 %172, %v93
    %v174 = vpop.permute.xlu0 %173
    %177 = vset.pattern.permute.xlu0 0
    %178 = vperm.xlu0 %177, %v94
    %v179 = vpop.permute.xlu0 %178
    %182 = vset.pattern.permute.xlu0 0
    %183 = vperm.xlu0 %182, %v95
    %v184 = vpop.permute.xlu0 %183
    %187 = vset.pattern.permute.xlu0 0
    %188 = vperm.xlu0 %187, %v96
    %v189 = vpop.permute.xlu0 %188
    %192 = vset.pattern.permute.xlu0 0
    %193 = vperm.xlu0 %192, %v97
    %v194 = vpop.permute.xlu0 %193
    %197 = vset.pattern.permute.xlu0 0
    %198 = vperm.xlu0 %197, %v98
    %v199 = vpop.permute.xlu0 %198
    %202 = vset.pattern.permute.xlu0 0
    %203 = vperm.xlu0 %202, %v99
    %v204 = vpop.permute.xlu0 %203
    %207 = vset.pattern.permute.xlu0 0
    %208 = vperm.xlu0 %207, %v100
    %v209 = vpop.permute.xlu0 %208
    %212 = vset.pattern.permute.xlu0 0
    %213 = vperm.xlu0 %212, %v101
    %v214 = vpop.permute.xlu0 %213
    %217 = vset.pattern.permute.xlu0 0
    %218 = vperm.xlu0 %217, %v102
    %v219 = vpop.permute.xlu0 %218
    %222 = vset.pattern.permute.xlu0 0
    %223 = vperm.xlu0 %222, %v103
    %v224 = vpop.permute.xlu0 %223
    %227 = vset.pattern.permute.xlu0 0
    %228 = vperm.xlu0 %227, %v104
    %v229 = vpop.permute.xlu0 %228
    %232 = vset.pattern.permute.xlu0 0
    %233 = vperm.xlu0 %232, %v105
    %v234 = vpop.permute.xlu0 %233
    %237 = vset.pattern.permute.xlu0 0
    %238 = vperm.xlu0 %237, %v106
    %v239 = vpop.permute.xlu0 %238
    %242 = vset.pattern.permute.xlu0 0
    %243 = vperm.xlu0 %242, %v107
    %v244 = vpop.permute.xlu0 %243
    %247 = vset.pattern.permute.xlu0 0
    %248 = vperm.xlu0 %247, %v108
    %v249 = vpop.permute.xlu0 %248
    %252 = vset.pattern.permute.xlu0 0
    %253 = vperm.xlu0 %252, %v109
    %v254 = vpop.permute.xlu0 %253
    %257 = vset.pattern.permute.xlu0 0
    %258 = vperm.xlu0 %257, %v110
    %v259 = vpop.permute.xlu0 %258
    %262 = vset.pattern.permute.xlu0 0
    %263 = vperm.xlu0 %262, %v111
    %v264 = vpop.permute.xlu0 %263
    %267 = vset.pattern.permute.xlu0 0
    %268 = vperm.xlu0 %267, %v112
    %v269 = vpop.permute.xlu0 %268
    %272 = vset.pattern.permute.xlu0 0
    %273 = vperm.xlu0 %272, %v113
    %v274 = vpop.permute.xlu0 %273
    %277 = vset.pattern.permute.xlu0 0
    %278 = vperm.xlu0 %277, %v114
    %v279 = vpop.permute.xlu0 %278
    %282 = vset.pattern.permute.xlu0 0
    %283 = vperm.xlu0 %282, %v115
    %v284 = vpop.permute.xlu0 %283
    %287 = vset.pattern.permute.xlu0 0
    %288 = vperm.xlu0 %287, %v116
    %v289 = vpop.permute.xlu0 %288
    %292 = vset.pattern.permute.xlu0 0
    %293 = vperm.xlu0 %292, %v117
    %v294 = vpop.permute.xlu0 %293
    %297 = vset.pattern.permute.xlu0 0
    %298 = vperm.xlu0 %297, %v118
    %v299 = vpop.permute.xlu0 %298
    %302 = vset.pattern.permute.xlu0 0
    %303 = vperm.xlu0 %302, %v119
    %v304 = vpop.permute.xlu0 %303
    %307 = vset.pattern.permute.xlu0 0
    %308 = vperm.xlu0 %307, %v120
    %v309 = vpop.permute.xlu0 %308
    %vm311 = vcmask 277504
    %v313 = vsel %vm311, %v45, 0
    %v316 = vsel %vm311, %v46, 0
    %v319 = vsel %vm311, %v47, 0
    %v322 = vsel %vm311, %v48, 0
    %v325 = vsel %vm311, %v49, 0
    %v328 = vsel %vm311, %v50, 0
    %v331 = vsel %vm311, %v51, 0
    %v334 = vsel %vm311, %v52, 0
    %v337 = vsel %vm311, %v53, 0
    %v340 = vsel %vm311, %v54, 0
    %v343 = vsel %vm311, %v55, 0
    %v346 = vsel %vm311, %v56, 0
    %v349 = vsel %vm311, %v57, 0
    %v352 = vsel %vm311, %v58, 0
    %v355 = vsel %vm311, %v59, 0
    %v358 = vsel %vm311, %v60, 0
    %v361 = vsel %vm311, %v61, 0
    %v364 = vsel %vm311, %v62, 0
    %v367 = vsel %vm311, %v63, 0
    %v370 = vsel %vm311, %v64, 0
    %v373 = vsel %vm311, %v65, 0
    %v376 = vsel %vm311, %v66, 0
    %v379 = vsel %vm311, %v67, 0
    %v382 = vsel %vm311, %v68, 0
    %v385 = vsel %vm311, %v69, 0
    %v388 = vsel %vm311, %v70, 0
    %v391 = vsel %vm311, %v71, 0
    %v394 = vsel %vm311, %v72, 0
    %v397 = vsel %vm311, %v73, 0
    %v400 = vsel %vm311, %v74, 0
    %v403 = vsel %vm311, %v75, 0
    %v406 = vsel %vm311, %v76, 0
    %v409 = vsel %vm311, %v77, 0
    %v412 = vsel %vm311, %v78, 0
    %v415 = vsel %vm311, %v79, 0
    %v418 = vsel %vm311, %v80, 0
    %v421 = vsel %vm311, %v81, 0
    %v424 = vsel %vm311, %v82, 0
    %v427 = vsel %vm311, %v29, 0
    %v430 = vsel %vm311, %v30, 0
    %v433 = vsel %vm311, %v31, 0
    %v436 = vsel %vm311, %v32, 0
    %v439 = vsel %vm311, %v33, 0
    %v442 = vsel %vm311, %v34, 0
    %v445 = vsel %vm311, %v35, 0
    %v448 = vsel %vm311, %v36, 0
    %v451 = vsel %vm311, %v37, 0
    %v454 = vsel %vm311, %v38, 0
    %v457 = vsel %vm311, %v39, 0
    %v460 = vsel %vm311, %v40, 0
    %v463 = vsel %vm311, %v41, 0
    %v466 = vsel %vm311, %v42, 0
    %v469 = vsel %vm311, %v43, 0
    %v472 = vsel %vm311, %v44, 0
    %474 = vmatprep.subr.mxu0 0.0
    %475 = vmatpush1.xpose.msra.mxu0 %v472
    %476 = vmatprep.subr.mxu0 0.0
    %477 = vmatpush1.xpose.msra.mxu0 %v469
    %478 = vmatprep.subr.mxu0 0.0
    %479 = vmatpush1.xpose.msra.mxu0 %v466
    %480 = vmatprep.subr.mxu0 0.0
    %481 = vmatpush1.xpose.msra.mxu0 %v463
    %482 = vmatprep.subr.mxu0 0.0
    %483 = vmatpush1.xpose.msra.mxu0 %v460
    %484 = vmatprep.subr.mxu0 0.0
    %485 = vmatpush1.xpose.msra.mxu0 %v457
    %486 = vmatprep.subr.mxu0 0.0
    %487 = vmatpush1.xpose.msra.mxu0 %v454
    %488 = vmatprep.subr.mxu0 0.0
    %489 = vmatpush1.xpose.msra.mxu0 %v451
    %490 = vmatprep.subr.mxu0 0.0
    %491 = vmatpush1.xpose.msra.mxu0 %v448
    %492 = vmatprep.subr.mxu0 0.0
    %493 = vmatpush1.xpose.msra.mxu0 %v445
    %494 = vmatprep.subr.mxu0 0.0
    %495 = vmatpush1.xpose.msra.mxu0 %v442
    %496 = vmatprep.subr.mxu0 0.0
    %497 = vmatpush1.xpose.msra.mxu0 %v439
    %498 = vmatprep.subr.mxu0 0.0
    %499 = vmatpush1.xpose.msra.mxu0 %v436
    %500 = vmatprep.subr.mxu0 0.0
    %501 = vmatpush1.xpose.msra.mxu0 %v433
    %502 = vmatprep.subr.mxu0 0.0
    %503 = vmatpush1.xpose.msra.mxu0 %v430
    %504 = vmatprep.subr.mxu0 0.0
    %505 = vmatpush1.xpose.msra.mxu0 %v427
    %506 = vmatprep.subr.mxu0 0.0
    %507 = vmatpush2.xpose.msra.mxu0 0.0
    %508 = vmatprep.subr.mxu0 0.0
    %509 = vmatpush2.xpose.msra.mxu0 0.0
    %510 = vmatprep.subr.mxu0 0.0
    %511 = vmatpush2.xpose.msra.mxu0 0.0
    %512 = vmatprep.subr.mxu0 0.0
    %513 = vmatpush2.xpose.msra.mxu0 0.0
    %514 = vmatprep.subr.mxu0 0.0
    %515 = vmatpush2.xpose.msra.mxu0 0.0
    %516 = vmatprep.subr.mxu0 0.0
    %517 = vmatpush2.xpose.msra.mxu0 0.0
    %518 = vmatprep.subr.mxu0 0.0
    %519 = vmatpush2.xpose.msra.mxu0 0.0
    %520 = vmatprep.subr.mxu0 0.0
    %521 = vmatpush2.xpose.msra.mxu0 0.0
    %522 = vmatprep.subr.mxu0 0.0
    %523 = vmatpush2.xpose.msra.mxu0 0.0
    %524 = vmatprep.subr.mxu0 0.0
    %525 = vmatpush2.xpose.msra.mxu0 0.0
    %526 = vmatprep.subr.mxu0 0.0
    %527 = vmatpush2.xpose.msra.mxu0 0.0
    %528 = vmatprep.subr.mxu0 0.0
    %529 = vmatpush2.xpose.msra.mxu0 0.0
    %530 = vmatprep.subr.mxu0 0.0
    %531 = vmatpush2.xpose.msra.mxu0 0.0
    %532 = vmatprep.subr.mxu0 0.0
    %533 = vmatpush2.xpose.msra.mxu0 0.0
    %534 = vmatprep.subr.mxu0 0.0
    %535 = vmatpush2.xpose.msra.mxu0 0.0
    %536 = vmatprep.subr.mxu0 0.0
    %537 = vmatpush2.xpose.msra.mxu0 0.0
    %538 = vmatprep.mubr.f32.mxu0 0.0
    %539 = vmatmul.mubr.f32.gmra.mxu0 %v313
    %v540 = vpop.f32.mrf.mxu0
    %v541 = vadd.f32 %v124, %v540
    %v542 = vpop.f32.mrf.mxu0
    %543 = vmatprep.mubr.f32.mxu0 0.0
    %544 = vmatmul.mubr.f32.gmra.mxu0 %v316
    %v545 = vpop.f32.mrf.mxu0
    %v546 = vadd.f32 %v129, %v545
    %v547 = vpop.f32.mrf.mxu0
    %548 = vmatprep.mubr.f32.mxu0 0.0
    %549 = vmatmul.mubr.f32.gmra.mxu0 %v319
    %v550 = vpop.f32.mrf.mxu0
    %v551 = vadd.f32 %v134, %v550
    %v552 = vpop.f32.mrf.mxu0
    %553 = vmatprep.mubr.f32.mxu0 0.0
    %554 = vmatmul.mubr.f32.gmra.mxu0 %v322
    %v555 = vpop.f32.mrf.mxu0
    %v556 = vadd.f32 %v139, %v555
    %v557 = vpop.f32.mrf.mxu0
    %558 = vmatprep.mubr.f32.mxu0 0.0
    %559 = vmatmul.mubr.f32.gmra.mxu0 %v325
    %v560 = vpop.f32.mrf.mxu0
    %v561 = vadd.f32 %v144, %v560
    %v562 = vpop.f32.mrf.mxu0
    %563 = vmatprep.mubr.f32.mxu0 0.0
    %564 = vmatmul.mubr.f32.gmra.mxu0 %v328
    %v565 = vpop.f32.mrf.mxu0
    %v566 = vadd.f32 %v149, %v565
    %v567 = vpop.f32.mrf.mxu0
    %568 = vmatprep.mubr.f32.mxu0 0.0
    %569 = vmatmul.mubr.f32.gmra.mxu0 %v331
    %v570 = vpop.f32.mrf.mxu0
    %v571 = vadd.f32 %v154, %v570
    %v572 = vpop.f32.mrf.mxu0
    %573 = vmatprep.mubr.f32.mxu0 0.0
    %574 = vmatmul.mubr.f32.gmra.mxu0 %v334
    %v575 = vpop.f32.mrf.mxu0
    %v576 = vadd.f32 %v159, %v575
    %v577 = vpop.f32.mrf.mxu0
    %578 = vmatprep.mubr.f32.mxu0 0.0
    %579 = vmatmul.mubr.f32.gmra.mxu0 %v337
    %v580 = vpop.f32.mrf.mxu0
    %v581 = vadd.f32 %v164, %v580
    %v582 = vpop.f32.mrf.mxu0
    %583 = vmatprep.mubr.f32.mxu0 0.0
    %584 = vmatmul.mubr.f32.gmra.mxu0 %v340
    %v585 = vpop.f32.mrf.mxu0
    %v586 = vadd.f32 %v169, %v585
    %v587 = vpop.f32.mrf.mxu0
    %588 = vmatprep.mubr.f32.mxu0 0.0
    %589 = vmatmul.mubr.f32.gmra.mxu0 %v343
    %v590 = vpop.f32.mrf.mxu0
    %v591 = vadd.f32 %v174, %v590
    %v592 = vpop.f32.mrf.mxu0
    %593 = vmatprep.mubr.f32.mxu0 0.0
    %594 = vmatmul.mubr.f32.gmra.mxu0 %v346
    %v595 = vpop.f32.mrf.mxu0
    %v596 = vadd.f32 %v179, %v595
    %v597 = vpop.f32.mrf.mxu0
    %598 = vmatprep.mubr.f32.mxu0 0.0
    %599 = vmatmul.mubr.f32.gmra.mxu0 %v349
    %v600 = vpop.f32.mrf.mxu0
    %v601 = vadd.f32 %v184, %v600
    %v602 = vpop.f32.mrf.mxu0
    %603 = vmatprep.mubr.f32.mxu0 0.0
    %604 = vmatmul.mubr.f32.gmra.mxu0 %v352
    %v605 = vpop.f32.mrf.mxu0
    %v606 = vadd.f32 %v189, %v605
    %v607 = vpop.f32.mrf.mxu0
    %608 = vmatprep.mubr.f32.mxu0 0.0
    %609 = vmatmul.mubr.f32.gmra.mxu0 %v355
    %v610 = vpop.f32.mrf.mxu0
    %v611 = vadd.f32 %v194, %v610
    %v612 = vpop.f32.mrf.mxu0
    %613 = vmatprep.mubr.f32.mxu0 0.0
    %614 = vmatmul.mubr.f32.gmra.mxu0 %v358
    %v615 = vpop.f32.mrf.mxu0
    %v616 = vadd.f32 %v199, %v615
    %v617 = vpop.f32.mrf.mxu0
    %618 = vmatprep.mubr.f32.mxu0 0.0
    %619 = vmatmul.mubr.f32.gmra.mxu0 %v361
    %v620 = vpop.f32.mrf.mxu0
    %v621 = vadd.f32 %v204, %v620
    %v622 = vpop.f32.mrf.mxu0
    %623 = vmatprep.mubr.f32.mxu0 0.0
    %624 = vmatmul.mubr.f32.gmra.mxu0 %v364
    %v625 = vpop.f32.mrf.mxu0
    %v626 = vadd.f32 %v209, %v625
    %v627 = vpop.f32.mrf.mxu0
    %628 = vmatprep.mubr.f32.mxu0 0.0
    %629 = vmatmul.mubr.f32.gmra.mxu0 %v367
    %v630 = vpop.f32.mrf.mxu0
    %v631 = vadd.f32 %v214, %v630
    %v632 = vpop.f32.mrf.mxu0
    %633 = vmatprep.mubr.f32.mxu0 0.0
    %634 = vmatmul.mubr.f32.gmra.mxu0 %v370
    %v635 = vpop.f32.mrf.mxu0
    %v636 = vadd.f32 %v219, %v635
    %v637 = vpop.f32.mrf.mxu0
    %638 = vmatprep.mubr.f32.mxu0 0.0
    %639 = vmatmul.mubr.f32.gmra.mxu0 %v373
    %v640 = vpop.f32.mrf.mxu0
    %v641 = vadd.f32 %v224, %v640
    %v642 = vpop.f32.mrf.mxu0
    %643 = vmatprep.mubr.f32.mxu0 0.0
    %644 = vmatmul.mubr.f32.gmra.mxu0 %v376
    %v645 = vpop.f32.mrf.mxu0
    %v646 = vadd.f32 %v229, %v645
    %v647 = vpop.f32.mrf.mxu0
    %648 = vmatprep.mubr.f32.mxu0 0.0
    %649 = vmatmul.mubr.f32.gmra.mxu0 %v379
    %v650 = vpop.f32.mrf.mxu0
    %v651 = vadd.f32 %v234, %v650
    %v652 = vpop.f32.mrf.mxu0
    %653 = vmatprep.mubr.f32.mxu0 0.0
    %654 = vmatmul.mubr.f32.gmra.mxu0 %v382
    %v655 = vpop.f32.mrf.mxu0
    %v656 = vadd.f32 %v239, %v655
    %v657 = vpop.f32.mrf.mxu0
    %658 = vmatprep.mubr.f32.mxu0 0.0
    %659 = vmatmul.mubr.f32.gmra.mxu0 %v385
    %v660 = vpop.f32.mrf.mxu0
    %v661 = vadd.f32 %v244, %v660
    %v662 = vpop.f32.mrf.mxu0
    %663 = vmatprep.mubr.f32.mxu0 0.0
    %664 = vmatmul.mubr.f32.gmra.mxu0 %v388
    %v665 = vpop.f32.mrf.mxu0
    %v666 = vadd.f32 %v249, %v665
    %v667 = vpop.f32.mrf.mxu0
    %668 = vmatprep.mubr.f32.mxu0 0.0
    %669 = vmatmul.mubr.f32.gmra.mxu0 %v391
    %v670 = vpop.f32.mrf.mxu0
    %v671 = vadd.f32 %v254, %v670
    %v672 = vpop.f32.mrf.mxu0
    %673 = vmatprep.mubr.f32.mxu0 0.0
    %674 = vmatmul.mubr.f32.gmra.mxu0 %v394
    %v675 = vpop.f32.mrf.mxu0
    %v676 = vadd.f32 %v259, %v675
    %v677 = vpop.f32.mrf.mxu0
    %678 = vmatprep.mubr.f32.mxu0 0.0
    %679 = vmatmul.mubr.f32.gmra.mxu0 %v397
    %v680 = vpop.f32.mrf.mxu0
    %v681 = vadd.f32 %v264, %v680
    %v682 = vpop.f32.mrf.mxu0
    %683 = vmatprep.mubr.f32.mxu0 0.0
    %684 = vmatmul.mubr.f32.gmra.mxu0 %v400
    %v685 = vpop.f32.mrf.mxu0
    %v686 = vadd.f32 %v269, %v685
    %v687 = vpop.f32.mrf.mxu0
    %688 = vmatprep.mubr.f32.mxu0 0.0
    %689 = vmatmul.mubr.f32.gmra.mxu0 %v403
    %v690 = vpop.f32.mrf.mxu0
    %v691 = vadd.f32 %v274, %v690
    %v692 = vpop.f32.mrf.mxu0
    %693 = vmatprep.mubr.f32.mxu0 0.0
    %694 = vmatmul.mubr.f32.gmra.mxu0 %v406
    %v695 = vpop.f32.mrf.mxu0
    %v696 = vadd.f32 %v279, %v695
    %v697 = vpop.f32.mrf.mxu0
    %698 = vmatprep.mubr.f32.mxu0 0.0
    %699 = vmatmul.mubr.f32.gmra.mxu0 %v409
    %v700 = vpop.f32.mrf.mxu0
    %v701 = vadd.f32 %v284, %v700
    %v702 = vpop.f32.mrf.mxu0
    %703 = vmatprep.mubr.f32.mxu0 0.0
    %704 = vmatmul.mubr.f32.gmra.mxu0 %v412
    %v705 = vpop.f32.mrf.mxu0
    %v706 = vadd.f32 %v289, %v705
    %v707 = vpop.f32.mrf.mxu0
    %708 = vmatprep.mubr.f32.mxu0 0.0
    %709 = vmatmul.mubr.f32.gmra.mxu0 %v415
    %v710 = vpop.f32.mrf.mxu0
    %v711 = vadd.f32 %v294, %v710
    %v712 = vpop.f32.mrf.mxu0
    %713 = vmatprep.mubr.f32.mxu0 0.0
    %714 = vmatmul.mubr.f32.gmra.mxu0 %v418
    %v715 = vpop.f32.mrf.mxu0
    %v716 = vadd.f32 %v299, %v715
    %v717 = vpop.f32.mrf.mxu0
    %718 = vmatprep.mubr.f32.mxu0 0.0
    %719 = vmatmul.mubr.f32.gmra.mxu0 %v421
    %v720 = vpop.f32.mrf.mxu0
    %v721 = vadd.f32 %v304, %v720
    %v722 = vpop.f32.mrf.mxu0
    %723 = vmatprep.mubr.f32.mxu0 0.0
    %724 = vmatmul.mubr.f32.gmra.mxu0 %v424
    %v725 = vpop.f32.mrf.mxu0
    %v726 = vadd.f32 %v309, %v725
    %v727 = vpop.f32.mrf.mxu0
    %728 = vdwg.mxu0
    %v729 = vmax.f32 %v541, 0.0
    %v730 = vmax.f32 %v546, 0.0
    %v731 = vmax.f32 %v551, 0.0
    %v732 = vmax.f32 %v556, 0.0
    %v733 = vmax.f32 %v561, 0.0
    %v734 = vmax.f32 %v566, 0.0
    %v735 = vmax.f32 %v571, 0.0
    %v736 = vmax.f32 %v576, 0.0
    %v737 = vmax.f32 %v581, 0.0
    %v738 = vmax.f32 %v586, 0.0
    %v739 = vmax.f32 %v591, 0.0
    %v740 = vmax.f32 %v596, 0.0
    %v741 = vmax.f32 %v601, 0.0
    %v742 = vmax.f32 %v606, 0.0
    %v743 = vmax.f32 %v611, 0.0
    %v744 = vmax.f32 %v616, 0.0
    %v745 = vmax.f32 %v621, 0.0
    %v746 = vmax.f32 %v626, 0.0
    %v747 = vmax.f32 %v631, 0.0
    %v748 = vmax.f32 %v636, 0.0
    %v749 = vmax.f32 %v641, 0.0
    %v750 = vmax.f32 %v646, 0.0
    %v751 = vmax.f32 %v651, 0.0
    %v752 = vmax.f32 %v656, 0.0
    %v753 = vmax.f32 %v661, 0.0
    %v754 = vmax.f32 %v666, 0.0
    %v755 = vmax.f32 %v671, 0.0
    %v756 = vmax.f32 %v676, 0.0
    %v757 = vmax.f32 %v681, 0.0
    %v758 = vmax.f32 %v686, 0.0
    %v759 = vmax.f32 %v691, 0.0
    %v760 = vmax.f32 %v696, 0.0
    %v761 = vmax.f32 %v701, 0.0
    %v762 = vmax.f32 %v706, 0.0
    %v763 = vmax.f32 %v711, 0.0
    %v764 = vmax.f32 %v716, 0.0
    %v765 = vmax.f32 %v721, 0.0
    %v766 = vmax.f32 %v726, 0.0
    %v767 = vld [vmem:[%s3] sm:$0xff]
    %v768 = vld [vmem:[%s3 + $0x8] sm:$0xff]
    %v769 = vld [vmem:[%s3 + $0x10] sm:$0xff]
    %v770 = vld [vmem:[%s3 + $0x18] sm:$0xff]
    %v771 = vld [vmem:[%s3 + $0x20] sm:$0xff]
    %v772 = vld [vmem:[%s3 + $0x28] sm:$0xff]
    %v773 = vld [vmem:[%s3 + $0x30] sm:$0xff]
    %v774 = vld [vmem:[%s3 + $0x38] sm:$0xff]
    %v775 = vld [vmem:[%s3 + $0x40] sm:$0xff]
    %v776 = vld [vmem:[%s3 + $0x48] sm:$0xff]
    %v777 = vld [vmem:[%s3 + $0x50] sm:$0xff]
    %v778 = vld [vmem:[%s3 + $0x58] sm:$0xff]
    %v779 = vld [vmem:[%s3 + $0x60] sm:$0xff]
    %v780 = vld [vmem:[%s3 + $0x68] sm:$0xff]
    %v781 = vld [vmem:[%s3 + $0x70] sm:$0xff]
    %v782 = vld [vmem:[%s3 + $0x78] sm:$0xff]
    %v783 = vld [vmem:[%s3 + $0x80] sm:$0xff]
    %v784 = vld [vmem:[%s3 + $0x88] sm:$0xff]
    %v785 = vld [vmem:[%s3 + $0x90] sm:$0xff]
    %v786 = vld [vmem:[%s3 + $0x98] sm:$0xff]
    %v787 = vld [vmem:[%s3 + $0xa0] sm:$0xff]
    %v788 = vld [vmem:[%s3 + $0xa8] sm:$0xff]
    %v789 = vld [vmem:[%s3 + $0xb0] sm:$0xff]
    %v790 = vld [vmem:[%s3 + $0xb8] sm:$0xff]
    %v791 = vld [vmem:[%s3 + $0xc0] sm:$0xff]
    %v792 = vld [vmem:[%s3 + $0xc8] sm:$0xff]
    %v793 = vld [vmem:[%s3 + $0xd0] sm:$0xff]
    %v794 = vld [vmem:[%s3 + $0xd8] sm:$0x7]
    %v795 = vld [vmem:[%s3 + $0xe0] sm:$0x7]
    %v796 = vld [vmem:[%s3 + $0xe8] sm:$0x7]
    %v797 = vld [vmem:[%s4] sm:$0xff]
    %v798 = vld [vmem:[%s4 + $0x8] sm:$0xff]
    %v799 = vld [vmem:[%s4 + $0x10] sm:$0xff]
    %v800 = vld [vmem:[%s4 + $0x18] sm:$0xff]
    %v801 = vld [vmem:[%s4 + $0x20] sm:$0xff]
    %v802 = vld [vmem:[%s4 + $0x28] sm:$0xff]
    %v803 = vld [vmem:[%s4 + $0x30] sm:$0xff]
    %v804 = vld [vmem:[%s4 + $0x38] sm:$0xff]
    %v805 = vld [vmem:[%s4 + $0x40] sm:$0xff]
    %v806 = vld [vmem:[%s4 + $0x48] sm:$0x7]
    %808 = vset.pattern.permute.xlu0 0
    %809 = vperm.xlu0 %808, %v797
    %v810 = vpop.permute.xlu0 %809
    %813 = vset.pattern.permute.xlu0 0
    %814 = vperm.xlu0 %813, %v798
    %v815 = vpop.permute.xlu0 %814
    %818 = vset.pattern.permute.xlu0 0
    %819 = vperm.xlu0 %818, %v799
    %v820 = vpop.permute.xlu0 %819
    %823 = vset.pattern.permute.xlu0 0
    %824 = vperm.xlu0 %823, %v800
    %v825 = vpop.permute.xlu0 %824
    %828 = vset.pattern.permute.xlu0 0
    %829 = vperm.xlu0 %828, %v801
    %v830 = vpop.permute.xlu0 %829
    %833 = vset.pattern.permute.xlu0 0
    %834 = vperm.xlu0 %833, %v802
    %v835 = vpop.permute.xlu0 %834
    %838 = vset.pattern.permute.xlu0 0
    %839 = vperm.xlu0 %838, %v803
    %v840 = vpop.permute.xlu0 %839
    %843 = vset.pattern.permute.xlu0 0
    %844 = vperm.xlu0 %843, %v804
    %v845 = vpop.permute.xlu0 %844
    %848 = vset.pattern.permute.xlu0 0
    %849 = vperm.xlu0 %848, %v805
    %v850 = vpop.permute.xlu0 %849
    %853 = vset.pattern.permute.xlu0 0
    %854 = vperm.xlu0 %853, %v806
    %v855 = vpop.permute.xlu0 %854
    %vm857 = vcmask 359424
    %v859 = vsel %vm857, %v769, 0
    %v862 = vsel %vm857, %v772, 0
    %v865 = vsel %vm857, %v775, 0
    %v868 = vsel %vm857, %v778, 0
    %v871 = vsel %vm857, %v781, 0
    %v874 = vsel %vm857, %v784, 0
    %v877 = vsel %vm857, %v787, 0
    %v880 = vsel %vm857, %v790, 0
    %v883 = vsel %vm857, %v793, 0
    %v886 = vsel %vm857, %v796, 0
    %vm888 = vcmask 1043456
    %v890 = vsel %vm888, %v766, 0
    %892 = vmatprep.subr.mxu0 0.0
    %893 = vmatpush1.msra.mxu0 %v744
    %894 = vmatprep.subr.mxu0 0.0
    %895 = vmatpush1.msra.mxu0 %v743
    %896 = vmatprep.subr.mxu0 0.0
    %897 = vmatpush1.msra.mxu0 %v742
    %898 = vmatprep.subr.mxu0 0.0
    %899 = vmatpush1.msra.mxu0 %v741
    %900 = vmatprep.subr.mxu0 0.0
    %901 = vmatpush1.msra.mxu0 %v740
    %902 = vmatprep.subr.mxu0 0.0
    %903 = vmatpush1.msra.mxu0 %v739
    %904 = vmatprep.subr.mxu0 0.0
    %905 = vmatpush1.msra.mxu0 %v738
    %906 = vmatprep.subr.mxu0 0.0
    %907 = vmatpush1.msra.mxu0 %v737
    %908 = vmatprep.subr.mxu0 0.0
    %909 = vmatpush1.msra.mxu0 %v736
    %910 = vmatprep.subr.mxu0 0.0
    %911 = vmatpush1.msra.mxu0 %v735
    %912 = vmatprep.subr.mxu0 0.0
    %913 = vmatpush1.msra.mxu0 %v734
    %914 = vmatprep.subr.mxu0 0.0
    %915 = vmatpush1.msra.mxu0 %v733
    %916 = vmatprep.subr.mxu0 0.0
    %917 = vmatpush1.msra.mxu0 %v732
    %918 = vmatprep.subr.mxu0 0.0
    %919 = vmatpush1.msra.mxu0 %v731
    %920 = vmatprep.subr.mxu0 0.0
    %921 = vmatpush1.msra.mxu0 %v730
    %922 = vmatprep.subr.mxu0 0.0
    %923 = vmatpush1.msra.mxu0 %v729
    %924 = vmatprep.subr.mxu0 0.0
    %925 = vmatpush2.msra.mxu0 %v760
    %926 = vmatprep.subr.mxu0 0.0
    %927 = vmatpush2.msra.mxu0 %v759
    %928 = vmatprep.subr.mxu0 0.0
    %929 = vmatpush2.msra.mxu0 %v758
    %930 = vmatprep.subr.mxu0 0.0
    %931 = vmatpush2.msra.mxu0 %v757
    %932 = vmatprep.subr.mxu0 0.0
    %933 = vmatpush2.msra.mxu0 %v756
    %934 = vmatprep.subr.mxu0 0.0
    %935 = vmatpush2.msra.mxu0 %v755
    %936 = vmatprep.subr.mxu0 0.0
    %937 = vmatpush2.msra.mxu0 %v754
    %938 = vmatprep.subr.mxu0 0.0
    %939 = vmatpush2.msra.mxu0 %v753
    %940 = vmatprep.subr.mxu0 0.0
    %941 = vmatpush2.msra.mxu0 %v752
    %942 = vmatprep.subr.mxu0 0.0
    %943 = vmatpush2.msra.mxu0 %v751
    %944 = vmatprep.subr.mxu0 0.0
    %945 = vmatpush2.msra.mxu0 %v750
    %946 = vmatprep.subr.mxu0 0.0
    %947 = vmatpush2.msra.mxu0 %v749
    %948 = vmatprep.subr.mxu0 0.0
    %949 = vmatpush2.msra.mxu0 %v748
    %950 = vmatprep.subr.mxu0 0.0
    %951 = vmatpush2.msra.mxu0 %v747
    %952 = vmatprep.subr.mxu0 0.0
    %953 = vmatpush2.msra.mxu0 %v746
    %954 = vmatprep.subr.mxu0 0.0
    %955 = vmatpush2.msra.mxu0 %v745
    %956 = vmatprep.mubr.f32.mxu0 %v768
    %957 = vmatmul.mubr.f32.gmra.mxu0 %v767
    %v958 = vpop.f32.mrf.mxu0
    %v959 = vadd.f32 %v810, %v958
    %v960 = vpop.f32.mrf.mxu0
    %961 = vmatprep.mubr.f32.mxu0 %v771
    %962 = vmatmul.mubr.f32.gmra.mxu0 %v770
    %v963 = vpop.f32.mrf.mxu0
    %v964 = vadd.f32 %v815, %v963
    %v965 = vpop.f32.mrf.mxu0
    %966 = vmatprep.mubr.f32.mxu0 %v774
    %967 = vmatmul.mubr.f32.gmra.mxu0 %v773
    %v968 = vpop.f32.mrf.mxu0
    %v969 = vadd.f32 %v820, %v968
    %v970 = vpop.f32.mrf.mxu0
    %971 = vmatprep.mubr.f32.mxu0 %v777
    %972 = vmatmul.mubr.f32.gmra.mxu0 %v776
    %v973 = vpop.f32.mrf.mxu0
    %v974 = vadd.f32 %v825, %v973
    %v975 = vpop.f32.mrf.mxu0
    %976 = vmatprep.mubr.f32.mxu0 %v780
    %977 = vmatmul.mubr.f32.gmra.mxu0 %v779
    %v978 = vpop.f32.mrf.mxu0
    %v979 = vadd.f32 %v830, %v978
    %v980 = vpop.f32.mrf.mxu0
    %981 = vmatprep.mubr.f32.mxu0 %v783
    %982 = vmatmul.mubr.f32.gmra.mxu0 %v782
    %v983 = vpop.f32.mrf.mxu0
    %v984 = vadd.f32 %v835, %v983
    %v985 = vpop.f32.mrf.mxu0
    %986 = vmatprep.mubr.f32.mxu0 %v786
    %987 = vmatmul.mubr.f32.gmra.mxu0 %v785
    %v988 = vpop.f32.mrf.mxu0
    %v989 = vadd.f32 %v840, %v988
    %v990 = vpop.f32.mrf.mxu0
    %991 = vmatprep.mubr.f32.mxu0 %v789
    %992 = vmatmul.mubr.f32.gmra.mxu0 %v788
    %v993 = vpop.f32.mrf.mxu0
    %v994 = vadd.f32 %v845, %v993
    %v995 = vpop.f32.mrf.mxu0
    %996 = vmatprep.mubr.f32.mxu0 %v792
    %997 = vmatmul.mubr.f32.gmra.mxu0 %v791
    %v998 = vpop.f32.mrf.mxu0
    %v999 = vadd.f32 %v850, %v998
    %v1000 = vpop.f32.mrf.mxu0
    %1001 = vmatprep.mubr.f32.mxu0 %v795
    %1002 = vmatmul.mubr.f32.gmra.mxu0 %v794
    %v1003 = vpop.f32.mrf.mxu0
    %v1004 = vadd.f32 %v855, %v1003
    %v1005 = vpop.f32.mrf.mxu0
    %1006 = vdwg.mxu0
    %1007 = vmatprep.subr.mxu0 0.0
    %1008 = vmatpush1.msra.mxu0 0.0
    %1009 = vmatprep.subr.mxu0 0.0
    %1010 = vmatpush1.msra.mxu0 0.0
    %1011 = vmatprep.subr.mxu0 0.0
    %1012 = vmatpush1.msra.mxu0 0.0
    %1013 = vmatprep.subr.mxu0 0.0
    %1014 = vmatpush1.msra.mxu0 0.0
    %1015 = vmatprep.subr.mxu0 0.0
    %1016 = vmatpush1.msra.mxu0 0.0
    %1017 = vmatprep.subr.mxu0 0.0
    %1018 = vmatpush1.msra.mxu0 0.0
    %1019 = vmatprep.subr.mxu0 0.0
    %1020 = vmatpush1.msra.mxu0 0.0
    %1021 = vmatprep.subr.mxu0 0.0
    %1022 = vmatpush1.msra.mxu0 0.0
    %1023 = vmatprep.subr.mxu0 0.0
    %1024 = vmatpush1.msra.mxu0 0.0
    %1025 = vmatprep.subr.mxu0 0.0
    %1026 = vmatpush1.msra.mxu0 0.0
    %1027 = vmatprep.subr.mxu0 0.0
    %1028 = vmatpush1.msra.mxu0 %v890
    %1029 = vmatprep.subr.mxu0 0.0
    %1030 = vmatpush1.msra.mxu0 %v765
    %1031 = vmatprep.subr.mxu0 0.0
    %1032 = vmatpush1.msra.mxu0 %v764
    %1033 = vmatprep.subr.mxu0 0.0
    %1034 = vmatpush1.msra.mxu0 %v763
    %1035 = vmatprep.subr.mxu0 0.0
    %1036 = vmatpush1.msra.mxu0 %v762
    %1037 = vmatprep.subr.mxu0 0.0
    %1038 = vmatpush1.msra.mxu0 %v761
    %1039 = vmatprep.subr.mxu0 0.0
    %1040 = vmatpush2.msra.mxu0 0.0
    %1041 = vmatprep.subr.mxu0 0.0
    %1042 = vmatpush2.msra.mxu0 0.0
    %1043 = vmatprep.subr.mxu0 0.0
    %1044 = vmatpush2.msra.mxu0 0.0
    %1045 = vmatprep.subr.mxu0 0.0
    %1046 = vmatpush2.msra.mxu0 0.0
    %1047 = vmatprep.subr.mxu0 0.0
    %1048 = vmatpush2.msra.mxu0 0.0
    %1049 = vmatprep.subr.mxu0 0.0
    %1050 = vmatpush2.msra.mxu0 0.0
    %1051 = vmatprep.subr.mxu0 0.0
    %1052 = vmatpush2.msra.mxu0 0.0
    %1053 = vmatprep.subr.mxu0 0.0
    %1054 = vmatpush2.msra.mxu0 0.0
    %1055 = vmatprep.subr.mxu0 0.0
    %1056 = vmatpush2.msra.mxu0 0.0
    %1057 = vmatprep.subr.mxu0 0.0
    %1058 = vmatpush2.msra.mxu0 0.0
    %1059 = vmatprep.subr.mxu0 0.0
    %1060 = vmatpush2.msra.mxu0 0.0
    %1061 = vmatprep.subr.mxu0 0.0
    %1062 = vmatpush2.msra.mxu0 0.0
    %1063 = vmatprep.subr.mxu0 0.0
    %1064 = vmatpush2.msra.mxu0 0.0
    %1065 = vmatprep.subr.mxu0 0.0
    %1066 = vmatpush2.msra.mxu0 0.0
    %1067 = vmatprep.subr.mxu0 0.0
    %1068 = vmatpush2.msra.mxu0 0.0
    %1069 = vmatprep.subr.mxu0 0.0
    %1070 = vmatpush2.msra.mxu0 0.0
    %1071 = vmatprep.mubr.f32.mxu0 0.0
    %1072 = vmatmul.mubr.f32.gmra.mxu0 %v859
    %v1073 = vpop.f32.mrf.mxu0
    %v1074 = vadd.f32 %v959, %v1073
    %v1075 = vpop.f32.mrf.mxu0
    %1076 = vmatprep.mubr.f32.mxu0 0.0
    %1077 = vmatmul.mubr.f32.gmra.mxu0 %v862
    %v1078 = vpop.f32.mrf.mxu0
    %v1079 = vadd.f32 %v964, %v1078
    %v1080 = vpop.f32.mrf.mxu0
    %1081 = vmatprep.mubr.f32.mxu0 0.0
    %1082 = vmatmul.mubr.f32.gmra.mxu0 %v865
    %v1083 = vpop.f32.mrf.mxu0
    %v1084 = vadd.f32 %v969, %v1083
    %v1085 = vpop.f32.mrf.mxu0
    %1086 = vmatprep.mubr.f32.mxu0 0.0
    %1087 = vmatmul.mubr.f32.gmra.mxu0 %v868
    %v1088 = vpop.f32.mrf.mxu0
    %v1089 = vadd.f32 %v974, %v1088
    %v1090 = vpop.f32.mrf.mxu0
    %1091 = vmatprep.mubr.f32.mxu0 0.0
    %1092 = vmatmul.mubr.f32.gmra.mxu0 %v871
    %v1093 = vpop.f32.mrf.mxu0
    %v1094 = vadd.f32 %v979, %v1093
    %v1095 = vpop.f32.mrf.mxu0
    %1096 = vmatprep.mubr.f32.mxu0 0.0
    %1097 = vmatmul.mubr.f32.gmra.mxu0 %v874
    %v1098 = vpop.f32.mrf.mxu0
    %v1099 = vadd.f32 %v984, %v1098
    %v1100 = vpop.f32.mrf.mxu0
    %1101 = vmatprep.mubr.f32.mxu0 0.0
    %1102 = vmatmul.mubr.f32.gmra.mxu0 %v877
    %v1103 = vpop.f32.mrf.mxu0
    %v1104 = vadd.f32 %v989, %v1103
    %v1105 = vpop.f32.mrf.mxu0
    %1106 = vmatprep.mubr.f32.mxu0 0.0
    %1107 = vmatmul.mubr.f32.gmra.mxu0 %v880
    %v1108 = vpop.f32.mrf.mxu0
    %v1109 = vadd.f32 %v994, %v1108
    %v1110 = vpop.f32.mrf.mxu0
    %1111 = vmatprep.mubr.f32.mxu0 0.0
    %1112 = vmatmul.mubr.f32.gmra.mxu0 %v883
    %v1113 = vpop.f32.mrf.mxu0
    %v1114 = vadd.f32 %v999, %v1113
    %v1115 = vpop.f32.mrf.mxu0
    %1116 = vmatprep.mubr.f32.mxu0 0.0
    %1117 = vmatmul.mubr.f32.gmra.mxu0 %v886
    %v1118 = vpop.f32.mrf.mxu0
    %v1119 = vadd.f32 %v1004, %v1118
    %v1120 = vpop.f32.mrf.mxu0
    %1121 = vdwg.mxu0
    %v1122 = vmax.f32 %v1074, 0.0
    %v1123 = vmax.f32 %v1079, 0.0
    %v1124 = vmax.f32 %v1084, 0.0
    %v1125 = vmax.f32 %v1089, 0.0
    %v1126 = vmax.f32 %v1094, 0.0
    %v1127 = vmax.f32 %v1099, 0.0
    %v1128 = vmax.f32 %v1104, 0.0
    %v1129 = vmax.f32 %v1109, 0.0
    %v1130 = vmax.f32 %v1114, 0.0
    %v1131 = vmax.f32 %v1119, 0.0
    %v1132 = vld [vmem:[%s5] sm:$0x1]
    %v1133 = vld [vmem:[#allocation2] sm:$0x1]
    %1135 = vset.pattern.permute.xlu0 0
    %1136 = vperm.xlu0 %1135, %v1133
    %v1137 = vpop.permute.xlu0 %1136
    %v1139 = vlaneseq
    %v1140 = vshrl.u32 %v1139, 7
    %v1141 = vsub.s32 0, %v1140
    %v1142 = vrot.slane %v1137, %v1141
    %vm1143 = vcmask 613376
    %v1145 = vsel %vm1143, %v1132, 0
    %vm1147 = vcmask 1042432
    %v1149 = vsel %vm1147, %v1131, 0
    %1151 = vmatprep.subr.mxu0 0.0
    %1152 = vmatpush1.msra.mxu0 0.0
    %1153 = vmatprep.subr.mxu0 0.0
    %1154 = vmatpush1.msra.mxu0 0.0
    %1155 = vmatprep.subr.mxu0 0.0
    %1156 = vmatpush1.msra.mxu0 0.0
    %1157 = vmatprep.subr.mxu0 0.0
    %1158 = vmatpush1.msra.mxu0 0.0
    %1159 = vmatprep.subr.mxu0 0.0
    %1160 = vmatpush1.msra.mxu0 0.0
    %1161 = vmatprep.subr.mxu0 0.0
    %1162 = vmatpush1.msra.mxu0 0.0
    %1163 = vmatprep.subr.mxu0 0.0
    %1164 = vmatpush1.msra.mxu0 %v1149
    %1165 = vmatprep.subr.mxu0 0.0
    %1166 = vmatpush1.msra.mxu0 %v1130
    %1167 = vmatprep.subr.mxu0 0.0
    %1168 = vmatpush1.msra.mxu0 %v1129
    %1169 = vmatprep.subr.mxu0 0.0
    %1170 = vmatpush1.msra.mxu0 %v1128
    %1171 = vmatprep.subr.mxu0 0.0
    %1172 = vmatpush1.msra.mxu0 %v1127
    %1173 = vmatprep.subr.mxu0 0.0
    %1174 = vmatpush1.msra.mxu0 %v1126
    %1175 = vmatprep.subr.mxu0 0.0
    %1176 = vmatpush1.msra.mxu0 %v1125
    %1177 = vmatprep.subr.mxu0 0.0
    %1178 = vmatpush1.msra.mxu0 %v1124
    %1179 = vmatprep.subr.mxu0 0.0
    %1180 = vmatpush1.msra.mxu0 %v1123
    %1181 = vmatprep.subr.mxu0 0.0
    %1182 = vmatpush1.msra.mxu0 %v1122
    %1183 = vmatprep.subr.mxu0 0.0
    %1184 = vmatpush2.msra.mxu0 0.0
    %1185 = vmatprep.subr.mxu0 0.0
    %1186 = vmatpush2.msra.mxu0 0.0
    %1187 = vmatprep.subr.mxu0 0.0
    %1188 = vmatpush2.msra.mxu0 0.0
    %1189 = vmatprep.subr.mxu0 0.0
    %1190 = vmatpush2.msra.mxu0 0.0
    %1191 = vmatprep.subr.mxu0 0.0
    %1192 = vmatpush2.msra.mxu0 0.0
    %1193 = vmatprep.subr.mxu0 0.0
    %1194 = vmatpush2.msra.mxu0 0.0
    %1195 = vmatprep.subr.mxu0 0.0
    %1196 = vmatpush2.msra.mxu0 0.0
    %1197 = vmatprep.subr.mxu0 0.0
    %1198 = vmatpush2.msra.mxu0 0.0
    %1199 = vmatprep.subr.mxu0 0.0
    %1200 = vmatpush2.msra.mxu0 0.0
    %1201 = vmatprep.subr.mxu0 0.0
    %1202 = vmatpush2.msra.mxu0 0.0
    %1203 = vmatprep.subr.mxu0 0.0
    %1204 = vmatpush2.msra.mxu0 0.0
    %1205 = vmatprep.subr.mxu0 0.0
    %1206 = vmatpush2.msra.mxu0 0.0
    %1207 = vmatprep.subr.mxu0 0.0
    %1208 = vmatpush2.msra.mxu0 0.0
    %1209 = vmatprep.subr.mxu0 0.0
    %1210 = vmatpush2.msra.mxu0 0.0
    %1211 = vmatprep.subr.mxu0 0.0
    %1212 = vmatpush2.msra.mxu0 0.0
    %1213 = vmatprep.subr.mxu0 0.0
    %1214 = vmatpush2.msra.mxu0 0.0
    %1215 = vmatprep.mubr.f32.mxu0 0.0
    %1216 = vmatmul.mubr.f32.gmra.mxu0 %v1145
    %v1217 = vpop.f32.mrf.mxu0
    %v1218 = vadd.f32 %v1142, %v1217
    %v1219 = vpop.f32.mrf.mxu0
    %1220 = vdwg.mxu0
    %1221 = vst [vmem:[#allocation3] sm:$0x1] %v1218
    // Predicated region
    $region30: #{tpu_custom_call.1} parent=1 // pred_check
      _
    $region31: #{tpu_custom_call.1} parent=1 // pred_check_branch
      %1223 = sbr.rel (0) target = $region33
    $region32: #{tpu_custom_call.1} parent=1 // pred_region
      %s1225 = ssub.s32 16, 16
      %1226 = vsyncadd [#allocation4], %s1225
      %s1228 = sshll.u32 [#allocation3], 4
      %s1229 = int_to_ptr.vmem [resolvable:$true] %s1228
      %1231 = dma.vmem_to_hbm [thread:$0]  %s1229, 16, %s7, [#allocation4]
    $region33: #{tpu_custom_call.1} parent=1 // pred_fallthru
      _
    // Predicated region
    $region34: #{tpu_custom_call.1} parent=1 // pred_check
      _
    $region35: #{tpu_custom_call.1} parent=1 // pred_check_branch
      %1233 = sbr.rel (0) target = $region37
    $region36: #{tpu_custom_call.1} parent=1 // pred_region
      %1234 = dma.done [#allocation4], 16
    $region37: #{tpu_custom_call.1} parent=1 // pred_fallthru
      _
    %1235 = vsyncpa [#allocation4], 1

</llo_original>
